<compile_context>
chip_gen: v6e
topology: v6e:2x2x1
jax: 0.10.0
libtpu: 0.0.40
codegen_flags: <defaults>
</compile_context>

<pallas_src>
import functools

import jax
import jax.numpy as jnp
from jax.experimental import pallas as pl
from jax.experimental.pallas import tpu as pltpu

_LANES = 128
_MIB = 1024 * 1024


def _round_up(v, m):
    return -(-v // m) * m


def _cdiv(a, b):
    return -(-a // b)


def _sublane_multiple(dtype):
    # Full packed vreg tile: 8 rows (4-byte), 16 rows (2-byte), 32 rows (1-byte).
    itemsize = jnp.dtype(dtype).itemsize
    return max(8, 32 // max(itemsize, 1))


@functools.lru_cache(maxsize=None)
def _chip_config():
    """Generation-aware block / scoped-VMEM sizing.

    v7x  : 64 MiB VMEM/TC, 2 TCs (megacore) -> 8 MiB blocks, 44 MiB scoped VMEM,
           split grid so each core gets >= 2 blocks when the tensor is large.
    v5e/v6e : 128 MiB VMEM, single TC -> 8 MiB blocks, 48 MiB scoped VMEM,
           no forced grid split (a single block is optimal for small tensors).
    Unknown backend: conservative settings that are safe on every generation.
    """
    try:
        vmem_bytes = int(pltpu.get_tpu_info().vmem_capacity_bytes)
    except Exception:
        return dict(max_block_bytes=4 * _MIB, vmem_limit_bytes=32 * _MIB,
                    dual_core=True)
    if vmem_bytes <= 96 * _MIB:  # v7x-class (64 MiB per TensorCore)
        return dict(max_block_bytes=8 * _MIB, vmem_limit_bytes=44 * _MIB,
                    dual_core=True)
    # v5e / v6e: 128 MiB physical VMEM, single TensorCore.
    return dict(max_block_bytes=8 * _MIB, vmem_limit_bytes=48 * _MIB,
                dual_core=False)


def _min_grid_steps(total_bytes, dual_core):
    if not dual_core:
        return 1                 # single TC: extra grid steps are pure overhead
    if total_bytes >= 1 * _MIB:
        return 4                 # >= 2 blocks per core: in/out DMA overlap per TC
    if total_bytes >= 128 * 1024:
        return 2                 # one block per core
    return 1


def _choose_block_rows(rows, bytes_per_row, sub, cfg):
    max_rows = max(sub, (cfg["max_block_bytes"] // bytes_per_row) // sub * sub)
    block_rows = min(rows, max_rows)
    steps = _min_grid_steps(rows * bytes_per_row, cfg["dual_core"])
    if steps > 1 and rows >= steps * sub:
        block_rows = min(block_rows, _round_up(_cdiv(rows, steps), sub))
    if block_rows >= rows:
        return rows                                   # single full block (legal)
    return max(sub, (block_rows // sub) * sub)        # multiple of packed tile


def _apply_act(x, act_func):
    """Elementwise activation on a VMEM-resident value.

    Non-sigmoid acts run in x's dtype (native bf16 on v6e/v7x; Mosaic auto-extends
    to f32 on v5e). Sigmoid runs in f32; the approximate reciprocal rides the
    otherwise-idle EUP slot (the kernel is HBM-bound, so it is free headroom).
    """
    if act_func == "relu":
        return jnp.maximum(x, 0)
    if act_func == "relu6":
        return jnp.minimum(jnp.maximum(x, 0), 6)
    if act_func == "sigmoid":
        xf = x.astype(jnp.float32)
        return pl.reciprocal(1.0 + jnp.exp(-xf), approx=True)
    if act_func in ("hsigmoid", "hard_sigmoid"):
        # MyHSigmoid: relu6(x + 3) * 0.16666667 (truncated constant is intentional,
        # matching the PyTorch module — do not "fix" to 1/6).
        return jnp.minimum(jnp.maximum(x + 3.0, 0), 6) * 0.16666667
    if act_func in ("hswish", "hard_swish"):
        # nn.Hardswish: x * relu6(x + 3) / 6
        return x * (jnp.minimum(jnp.maximum(x + 3.0, 0), 6) * (1.0 / 6.0))
    raise NotImplementedError(act_func)


def _activation_kernel(x_ref, o_ref, *, act_func):
    o_ref[...] = _apply_act(x_ref[...], act_func).astype(o_ref.dtype)


def _scale_bias_act_kernel(x_ref, s_ref, b_ref, o_ref, *, act_func):
    # Folded-BN affine in f32, then activation, then cast back: one HBM round trip
    # instead of (BN output store) + (activation load + store).
    y = x_ref[...].astype(jnp.float32) * s_ref[...] + b_ref[...]
    if act_func is not None:
        y = _apply_act(y, act_func)
    o_ref[...] = y.astype(o_ref.dtype)


def _lane_dense_pallas(slab, act_func, dtype, alias):
    rows = slab.shape[0]
    cfg = _chip_config()
    sub = _sublane_multiple(dtype)
    bytes_per_row = _LANES * jnp.dtype(dtype).itemsize
    block_rows = _choose_block_rows(rows, bytes_per_row, sub, cfg)
    grid = (_cdiv(rows, block_rows),)
    kernel = functools.partial(_activation_kernel, act_func=act_func)
    return pl.pallas_call(
        kernel,
        out_shape=jax.ShapeDtypeStruct((rows, _LANES), dtype),
        grid_spec=pltpu.PrefetchScalarGridSpec(
            num_scalar_prefetch=0,
            grid=grid,
            in_specs=[pl.BlockSpec((block_rows, _LANES), lambda i: (i, 0))],
            out_specs=pl.BlockSpec((block_rows, _LANES), lambda i: (i, 0)),
        ),
        compiler_params=pltpu.CompilerParams(
            dimension_semantics=("parallel",),
            vmem_limit_bytes=cfg["vmem_limit_bytes"],
        ),
        input_output_aliases={0: 0} if alias else {},
    )(slab)


def activation(x, act_func, *, donate_input=False):
    """GhostNetv2 `Activation` forward pass as a Pallas TPU kernel.

    x: any shape (op is elementwise; NCHW in the backbone).
    donate_input: alias the output onto the input slab; this only saves HBM if the
      caller actually donates x (jax.jit donate_argnums) and n % 128 == 0.
    """
    orig_shape, dtype, n = x.shape, x.dtype, x.size
    if n == 0:
        return x
    x_flat = x.reshape(-1)                    # contiguous reshape: free
    rows, tail = divmod(n, _LANES)

    if rows == 0:
        # < 128 elements: a pallas launch is pure overhead; plain XLA.
        return _reference(x_flat, act_func).reshape(orig_shape)

    if tail == 0:
        slab = x_flat.reshape(rows, _LANES)   # lane-dense slab, zero-copy
        out = _lane_dense_pallas(slab, act_func, dtype, donate_input)
        return out.reshape(orig_shape)

    # Misaligned element count: aligned (rows, 128) main slab through the kernel
    # (full-width unmasked vst, 128-lane DMA rows) + a <=127-element tail in XLA.
    # TODO(synk): the slice + concatenate cost one extra XLA copy of the tensor;
    # zero-copy would need caller-side 128-element padding of the channel layout.
    main = x_flat[: rows * _LANES].reshape(rows, _LANES)
    main_out = _lane_dense_pallas(main, act_func, dtype, False)
    tail_out = _reference(x_flat[rows * _LANES:], act_func)
    return jnp.concatenate([main_out.reshape(-1), tail_out]).reshape(orig_shape)


def bn_act(x, scale, bias, act_func="relu"):
    """Fused folded-BatchNorm (per-channel scale/bias) + activation — the ConvUnit
    BN+Act epilogue.  x: (N, C, H, W); scale, bias: (C,) with
      scale = gamma / sqrt(running_var + eps), bias = beta - running_mean * scale.
    Pass act_func=None for ConvUnit(use_act=False).
    """
    N, C, H, W = x.shape
    rows, hw = N * C, H * W
    dtype = x.dtype
    slab = x.reshape(rows, hw)
    s2 = jnp.broadcast_to(scale.astype(jnp.float32)[None, :], (N, C)).reshape(rows, 1)
    b2 = jnp.broadcast_to(bias.astype(jnp.float32)[None, :], (N, C)).reshape(rows, 1)

    cfg = _chip_config()
    sub = _sublane_multiple(dtype)
    bytes_per_row = _round_up(hw, _LANES) * jnp.dtype(dtype).itemsize
    block_rows = _choose_block_rows(rows, bytes_per_row, sub, cfg)
    grid = (_cdiv(rows, block_rows),)
    kernel = functools.partial(_scale_bias_act_kernel, act_func=act_func)
    out = pl.pallas_call(
        kernel,
        out_shape=jax.ShapeDtypeStruct((rows, hw), dtype),
        grid_spec=pltpu.PrefetchScalarGridSpec(
            num_scalar_prefetch=0,
            grid=grid,
            in_specs=[
                pl.BlockSpec((block_rows, hw), lambda i: (i, 0)),
                pl.BlockSpec((block_rows, 1), lambda i: (i, 0)),
                pl.BlockSpec((block_rows, 1), lambda i: (i, 0)),
            ],
            out_specs=pl.BlockSpec((block_rows, hw), lambda i: (i, 0)),
        ),
        compiler_params=pltpu.CompilerParams(
            dimension_semantics=("parallel",),
            vmem_limit_bytes=cfg["vmem_limit_bytes"],
        ),
    )(slab, s2, b2)
    return out.reshape(N, C, H, W)


def _reference(x, act_func):
    """Pure-jnp reference (also used for <128-element tails)."""
    xf = x.astype(jnp.float32)
    if act_func == "relu":
        y = jnp.maximum(xf, 0.0)
    elif act_func == "relu6":
        y = jnp.clip(xf, 0.0, 6.0)
    elif act_func == "sigmoid":
        y = jax.nn.sigmoid(xf)
    elif act_func in ("hsigmoid", "hard_sigmoid"):
        y = jnp.clip(xf + 3.0, 0.0, 6.0) * 0.16666667
    elif act_func in ("hswish", "hard_swish"):
        y = xf * jnp.clip(xf + 3.0, 0.0, 6.0) / 6.0
    elif act_func is None:
        y = xf
    else:
        raise NotImplementedError(act_func)
    return y.astype(x.dtype)


if __name__ == "__main__":
    ok = True
    key = jax.random.PRNGKey(0)
    kx, ks, kb, km = jax.random.split(key, 4)

    # NCHW activation, lane-dense path (2*4*16*16 = 2048 -> (16, 128) slab).
    x = jax.random.normal(kx, (2, 4, 16, 16), dtype=jnp.float32) * 4.0
    for act in ("relu", "relu6", "sigmoid", "hsigmoid", "hard_sigmoid",
                "hswish", "hard_swish"):
        y = jax.block_until_ready(activation(x, act))
        ref = _reference(x, act)
        tol = 5e-3 if act == "sigmoid" else 1e-5   # approx EUP reciprocal
        ok &= (y.shape == x.shape) and (y.dtype == x.dtype)
        ok &= bool(jnp.allclose(y, ref, atol=tol, rtol=tol))

    # Non-128-aligned element count (726): aligned (5,128) main slab + jnp tail.
    x2 = jax.random.normal(km, (2, 3, 11, 11), dtype=jnp.float32) * 4.0
    y2 = jax.block_until_ready(activation(x2, "hswish"))
    ok &= bool(jnp.allclose(y2, _reference(x2, "hswish"), atol=1e-5, rtol=1e-5))

    # bf16: native bf16 math for the hard activations, f32 + EUP for sigmoid.
    x3 = x.astype(jnp.bfloat16)
    y3 = jax.block_until_ready(activation(x3, "sigmoid"))
    ok &= (y3.dtype == jnp.bfloat16)
    ok &= bool(jnp.allclose(y3.astype(jnp.float32),
                            jax.nn.sigmoid(x3.astype(jnp.float32)),
                            atol=2e-2, rtol=2e-2))
    y4 = jax.block_until_ready(activation(x3, "hswish"))
    ref4 = _reference(x3, "hswish").astype(jnp.float32)
    ok &= bool(jnp.allclose(y4.astype(jnp.float32), ref4, atol=1e-1, rtol=5e-2))

    # Fused folded-BN + activation (ConvUnit epilogue).
    scale = jax.random.uniform(ks, (4,), jnp.float32, 0.5, 1.5)
    bias = jax.random.normal(kb, (4,), jnp.float32)
    y5 = jax.block_until_ready(bn_act(x, scale, bias, "relu"))
    ref5 = jnp.maximum(x * scale[None, :, None, None] + bias[None, :, None, None], 0.0)
    ok &= bool(jnp.allclose(y5, ref5, atol=1e-5, rtol=1e-5))

    print("KERNEL_OK" if ok else "KERNEL_MISMATCH")
</pallas_src>

<mosaic_0001>
module attributes {stable_mosaic.version = 11 : i64} {
  func.func @_activation_kernel(%arg0: i32, %arg1: memref<16x128xf32, #tpu.memory_space<vmem>>, %arg2: memref<16x128xf32, #tpu.memory_space<vmem>>) attributes {dimension_semantics = [#tpu.dimension_semantics<parallel>], iteration_bounds = array<i64: 1>, scalar_prefetch = 0 : i64, scratch_operands = 0 : i64, tpu.core_type = #tpu.core_type<tc>, window_params = [{transform_indices = @transform_0, window_bounds = array<i64: 16, 128>}, {transform_indices = @transform_1, window_bounds = array<i64: 16, 128>}]} {
    %c0 = arith.constant 0 : index
    %c0_0 = arith.constant 0 : index
    %0 = vector.load %arg1[%c0, %c0_0] : memref<16x128xf32, #tpu.memory_space<vmem>>, vector<16x128xf32>
    %cst = arith.constant 0.000000e+00 : f32
    %1 = vector.broadcast %cst : f32 to vector<16x128xf32>
    %2 = arith.maximumf %0, %1 : vector<16x128xf32>
    %c0_1 = arith.constant 0 : index
    %c0_2 = arith.constant 0 : index
    %3 = vector.load %arg2[%c0_1, %c0_2] : memref<16x128xf32, #tpu.memory_space<vmem>>, vector<16x128xf32>
    tpu.vector_store %arg2[%c0_1, %c0_2], %2 {strides = array<i32>} : memref<16x128xf32, #tpu.memory_space<vmem>>, vector<16x128xf32>,
    return
  }
  func.func @transform_0(%arg0: i32) -> (i32, i32) {
    %c0_i32 = arith.constant 0 : i32
    %c0_i32_0 = arith.constant 0 : i32
    return %arg0, %c0_i32 : i32, i32
  }
  func.func @transform_1(%arg0: i32) -> (i32, i32) {
    %c0_i32 = arith.constant 0 : i32
    %c0_i32_0 = arith.constant 0 : i32
    return %arg0, %c0_i32 : i32, i32
  }
}

</mosaic_0001>

<llo_original>
// kernel: tpu_custom_call.1
$region0: #{tpu_custom_call.1}
  #allocation0 [shape = 'u32[]', space=smem, size = 0x4, offset = 0x4, fixed_abs, tag = 'smem constant byte address 0x4 - core index']
  #allocation1 [shape = 'u32[144,128]{1,0:T(1,128)}', space=vmem, size = 0x12000, scoped, tag = 'internal scratch']
  %s0 = inlined_call_operand.hbm [shape: f32[16,128], index: 0, kind: input, shape index: {}]
  %s1 = inlined_call_operand.hbm [shape: f32[16,128], index: 1, kind: output, shape index: {}]
  %s2 = sld [smem:[#allocation0]]
  $region18: #{tpu_custom_call.1} parent=0
    _
  %s4 = ssub.s32 1, %s2
  %s5 = scalar_select 0, %s4, %s2
  $region1: #{tpu_custom_call.1} parent=0
    #allocation2 [shape = 'u8[8192]{0}', space=vmem, size = 0x2000, scoped, tag = 'input window, operand 0, single buffered']
    #allocation3 [shape = 's32[1]{0}', space=sflag, size = 0x4, scoped, tag = 'scoped memory for tpu_custom_call.1']
    #allocation4 [shape = 's32[1]{0}', space=sflag, size = 0x4, scoped, tag = 'scoped memory for tpu_custom_call.1']
    #allocation5 [shape = 'u8[8192]{0}', space=vmem, size = 0x2000, scoped, tag = 'output window, operand 0, single buffered']
    %6 = vsyncpa [#allocation3], 0
    %7 = vsyncpa [#allocation4], 0
    // Predicated region
    $region2: #{tpu_custom_call.1} parent=1 // pred_check
      _
    $region3: #{tpu_custom_call.1} parent=1 // pred_check_branch
      %9 = sbr.rel (0) target = $region5
    $region4: #{tpu_custom_call.1} parent=1 // pred_region
      %s11 = ssub.s32 256, 256
      %12 = vsyncadd [#allocation3], %s11
      %s13 = sshll.u32 [#allocation2], 4
      %s14 = int_to_ptr.vmem [resolvable:$true] %s13
      %19 = dma.hbm_to_vmem [thread:$0]  %s0, 256, %s14, [#allocation3], 128, 128, 8
    $region5: #{tpu_custom_call.1} parent=1 // pred_fallthru
      _
    // Predicated region
    $region6: #{tpu_custom_call.1} parent=1 // pred_check
      _
    $region7: #{tpu_custom_call.1} parent=1 // pred_check_branch
      %21 = sbr.rel (0) target = $region9
    $region8: #{tpu_custom_call.1} parent=1 // pred_region
      %22 = dma.done [#allocation3], 256
    $region9: #{tpu_custom_call.1} parent=1 // pred_fallthru
      _
    %v23 = vld [vmem:[#allocation2] sm:$0xff]
    %v24 = vld [vmem:[#allocation2 + $0x8] sm:$0xff]
    %v25 = vmax.f32 %v23, 0.0
    %v26 = vmax.f32 %v24, 0.0
    %27 = vst [vmem:[#allocation5] sm:$0xff] %v25
    %28 = vst [vmem:[#allocation5 + $0x8] sm:$0xff] %v26
    // Predicated region
    $region10: #{tpu_custom_call.1} parent=1 // pred_check
      _
    $region11: #{tpu_custom_call.1} parent=1 // pred_check_branch
      %30 = sbr.rel (0) target = $region13
    $region12: #{tpu_custom_call.1} parent=1 // pred_region
      %s32 = ssub.s32 256, 256
      %33 = vsyncadd [#allocation4], %s32
      %s34 = sshll.u32 [#allocation5], 4
      %s35 = int_to_ptr.vmem [resolvable:$true] %s34
      %40 = dma.vmem_to_hbm [thread:$0]  %s35, 256, %s1, [#allocation4], 128, 128, 8
    $region13: #{tpu_custom_call.1} parent=1 // pred_fallthru
      _
    // Predicated region
    $region14: #{tpu_custom_call.1} parent=1 // pred_check
      _
    $region15: #{tpu_custom_call.1} parent=1 // pred_check_branch
      %42 = sbr.rel (0) target = $region17
    $region16: #{tpu_custom_call.1} parent=1 // pred_region
      %43 = dma.done [#allocation4], 256
    $region17: #{tpu_custom_call.1} parent=1 // pred_fallthru
      _
    %44 = vsyncpa [#allocation3], 1
    %45 = vsyncpa [#allocation4], 1

</llo_original>
